<compile_context>
chip_gen: v7x
topology: tpu7x:2x2x1
jax: 0.10.0
libtpu: 0.0.40
codegen_flags: <defaults>
</compile_context>

<pallas_src>
import functools
import math

import jax
import jax.numpy as jnp
from jax.experimental import pallas as pl
from jax.experimental.pallas import tpu as pltpu

LANES = 128
# 4096 x 128 f32 = 2 MiB per input block (double-buffered x 2 inputs = 8 MiB VMEM).
_TILE_CANDIDATES = (4096, 2048, 1024, 512, 256, 128, 64, 32, 16, 8)


def _min_tile_rows(*dtypes):
    """Smallest legal/clean row tile given sublane packing of the input dtypes."""
    itemsize = min(jnp.dtype(d).itemsize for d in dtypes)
    return 8 * max(1, 4 // itemsize)        # 8 (f32) / 16 (bf16) / 32 (int8/fp8)


def _choose_tile(rows0, min_rows):
    """Return (tile_rows, acc_rows)."""
    if rows0 < min_rows:
        # Tiny input: one full-extent block (block dim == array dim is allowed).
        return rows0, (8 if rows0 % 8 == 0 else 1)
    for t in _TILE_CANDIDATES:
        if min_rows <= t <= rows0:
            return t, 8
    return min_rows, 8


def _loss_sum_kernel(z_ref, t_ref, o_ref, *, kind, n_total, tile_rows, acc_rows,
                     need_mask):
    """Streaming sum-reduction of the per-element loss into a resident (acc_rows,128)
    f32 output block (accumulator pattern: out index_map constant across the grid)."""
    step = pl.program_id(0)

    @pl.when(step == 0)
    def _():
        o_ref[...] = jnp.zeros_like(o_ref)

    z = z_ref[...].astype(jnp.float32)
    t = t_ref[...].astype(jnp.float32)

    if kind == "bernoulli":
        # numerically stable BCE-with-logits (matches torch):
        #   max(z, 0) - z*t + log1p(exp(-|z|))
        loss = jnp.maximum(z, 0.0) - z * t + jnp.log1p(jnp.exp(-jnp.abs(z)))
    else:  # gaussian
        d = jax.nn.sigmoid(z) - t
        loss = d * d

    def _accum(vals):
        if acc_rows == 8:
            # fold to (8,128) with pure cross-vreg VALU adds (no per-step XLU reduce)
            o_ref[...] += vals.reshape(tile_rows // 8, 8, LANES).sum(axis=0)
        else:
            o_ref[...] += jnp.sum(vals, axis=0, keepdims=True)

    if need_mask:
        last = pl.num_programs(0) - 1

        @pl.when(step != last)
        def _():
            _accum(loss)

        @pl.when(step == last)
        def _():
            # Only the last block can contain out-of-bounds rows / padded lanes:
            # zero them via a select (kills any OOB garbage, incl. NaN/Inf).
            row = jax.lax.broadcasted_iota(jnp.int32, (tile_rows, LANES), 0)
            lane = jax.lax.broadcasted_iota(jnp.int32, (tile_rows, LANES), 1)
            gidx = (step * tile_rows + row) * LANES + lane
            _accum(jnp.where(gidx < n_total, loss, 0.0))
    else:
        _accum(loss)


def _as_rows_by_lanes(a, rows0):
    """Return `a` viewed as (rows0, 128). Pure bitcast reshape when the element
    count is a multiple of 128; otherwise pad the flat array by <128 elements."""
    flat = jnp.ravel(a)
    pad = rows0 * LANES - flat.shape[0]
    if pad:
        # TODO(synk): copy-free tail handling for n % 128 != 0 would need a
        # pl.ANY ref + manual DMA of the ragged tail; padding <=127 elems for now.
        flat = jnp.pad(flat, (0, pad))
    return flat.reshape(rows0, LANES)


def _loss_sum(z2d, t2d, *, kind, n_total, tile_rows, acc_rows, steps, need_mask,
              in_bytes):
    blk = pl.BlockSpec((tile_rows, LANES), lambda i: (i, 0))
    out = pl.pallas_call(
        functools.partial(
            _loss_sum_kernel, kind=kind, n_total=n_total, tile_rows=tile_rows,
            acc_rows=acc_rows, need_mask=need_mask),
        out_shape=jax.ShapeDtypeStruct((acc_rows, LANES), jnp.float32),
        grid_spec=pltpu.PrefetchScalarGridSpec(
            num_scalar_prefetch=0,
            grid=(steps,),
            in_specs=[blk, blk],
            out_specs=pl.BlockSpec((acc_rows, LANES), lambda i: (0, 0)),
        ),
        compiler_params=pltpu.CompilerParams(dimension_semantics=("arbitrary",)),
        cost_estimate=pl.CostEstimate(
            flops=6 * n_total,
            transcendentals=(2 * n_total if kind == "bernoulli" else n_total),
            bytes_accessed=in_bytes + acc_rows * LANES * 4),
    )(z2d, t2d)
    # tiny (acc_rows, 128) cross-sublane/lane reduce, once, outside the hot loop
    return jnp.sum(out)


@functools.partial(jax.jit, static_argnames=("distribution",))
def reconstruction_loss(x, x_recon, distribution):
    """Pallas equivalent of Reconstruction_Loss.forward."""
    batch_size = x.shape[0]
    assert batch_size != 0

    if distribution not in ("bernoulli", "gaussian"):
        # unknown distribution returns None (same as the torch module)
        return None

    n = math.prod(x.shape)
    rows0 = -(-n // LANES)
    tile_rows, acc_rows = _choose_tile(rows0, _min_tile_rows(x.dtype, x_recon.dtype))
    steps = -(-rows0 // tile_rows)
    need_mask = (steps * tile_rows * LANES != n)

    z2d = _as_rows_by_lanes(x_recon, rows0)
    t2d = _as_rows_by_lanes(x, rows0)
    in_bytes = n * (x.dtype.itemsize + x_recon.dtype.itemsize)

    total = _loss_sum(z2d, t2d, kind=distribution, n_total=n, tile_rows=tile_rows,
                      acc_rows=acc_rows, steps=steps, need_mask=need_mask,
                      in_bytes=in_bytes)
    return total / batch_size


# ----------------------------- pure-JAX reference -----------------------------
def _ref_loss(x, x_recon, distribution):
    b = x.shape[0]
    z = x_recon.astype(jnp.float32)
    t = x.astype(jnp.float32)
    if distribution == "bernoulli":
        loss = jnp.maximum(z, 0.0) - z * t + jnp.log1p(jnp.exp(-jnp.abs(z)))
        return jnp.sum(loss) / b
    elif distribution == "gaussian":
        p = jax.nn.sigmoid(z)
        return jnp.sum((p - t) ** 2) / b
    return None


if __name__ == "__main__":
    key = jax.random.PRNGKey(0)
    k1, k2, k3, k4, k5, k6 = jax.random.split(key, 6)

    def check(x, z):
        for dist in ("bernoulli", "gaussian"):
            out = reconstruction_loss(x, z, dist)
            jax.block_until_ready(out)
            ref = _ref_loss(x, z, dist)
            assert jnp.allclose(out, ref, rtol=2e-5, atol=1e-3), (dist, out, ref)

    # NCHW like PyTorch; element count multiple of 128 -> zero-copy reshape,
    # single grid step, no mask.
    x = jax.random.uniform(k1, (2, 4, 16, 16), dtype=jnp.float32)       # targets in [0,1]
    zl = jax.random.normal(k2, (2, 4, 16, 16), dtype=jnp.float32)       # logits
    check(x, zl)

    # element count NOT a multiple of 128 -> tiny pad + in-kernel lane/row masking
    x2 = jax.random.uniform(k3, (2, 3, 10, 10), dtype=jnp.float32)
    z2 = jax.random.normal(k4, (2, 3, 10, 10), dtype=jnp.float32)
    check(x2, z2)

    # multi-step grid: exercises accumulator init/accumulate across steps and the
    # masked out-of-bounds boundary block on the last step (no padding needed).
    x3 = jax.random.uniform(k5, (2, 4, 32, 160), dtype=jnp.float32)
    z3 = jax.random.normal(k6, (2, 4, 32, 160), dtype=jnp.float32)
    check(x3, z3)

    assert reconstruction_loss(x, zl, "other") is None

    print("KERNEL_OK")
</pallas_src>

<mosaic_0001>
module attributes {stable_mosaic.version = 11 : i64} {
  func.func @_loss_sum_kernel(%arg0: i32, %arg1: memref<16x128xf32, #tpu.memory_space<vmem>>, %arg2: memref<16x128xf32, #tpu.memory_space<vmem>>, %arg3: memref<8x128xf32, #tpu.memory_space<vmem>>) attributes {dimension_semantics = [#tpu.dimension_semantics<arbitrary>], iteration_bounds = array<i64: 1>, scalar_prefetch = 0 : i64, scratch_operands = 0 : i64, tpu.core_type = #tpu.core_type<tc>, window_params = [{transform_indices = @transform_0, window_bounds = array<i64: 16, 128>}, {transform_indices = @transform_1, window_bounds = array<i64: 16, 128>}, {pipeline_mode = #tpu.pipeline_mode<synchronous>, transform_indices = @transform_2, window_bounds = array<i64: 8, 128>}]} {
    %c0_i32 = arith.constant 0 : i32
    %0 = arith.cmpi eq, %arg0, %c0_i32 : i32
    %1 = arith.extui %0 : i1 to i32
    %c0_i32_0 = arith.constant 0 : i32
    %2 = arith.cmpi ne, %1, %c0_i32_0 : i32
    scf.if %2 {
      %cst_10 = arith.constant 0.000000e+00 : f32
      %20 = vector.broadcast %cst_10 : f32 to vector<8x128xf32>
      %c0_11 = arith.constant 0 : index
      %c0_12 = arith.constant 0 : index
      %21 = vector.load %arg3[%c0_11, %c0_12] : memref<8x128xf32, #tpu.memory_space<vmem>>, vector<8x128xf32>
      tpu.vector_store %arg3[%c0_11, %c0_12], %20 {strides = array<i32>} : memref<8x128xf32, #tpu.memory_space<vmem>>, vector<8x128xf32>,
    } else {
    }
    %c0 = arith.constant 0 : index
    %c0_1 = arith.constant 0 : index
    %3 = vector.load %arg1[%c0, %c0_1] : memref<16x128xf32, #tpu.memory_space<vmem>>, vector<16x128xf32>
    %c0_2 = arith.constant 0 : index
    %c0_3 = arith.constant 0 : index
    %4 = vector.load %arg2[%c0_2, %c0_3] : memref<16x128xf32, #tpu.memory_space<vmem>>, vector<16x128xf32>
    %cst = arith.constant 0.000000e+00 : f32
    %5 = vector.broadcast %cst : f32 to vector<16x128xf32>
    %6 = arith.maximumf %3, %5 : vector<16x128xf32>
    %7 = arith.mulf %3, %4 : vector<16x128xf32>
    %8 = arith.subf %6, %7 : vector<16x128xf32>
    %9 = math.absf %3 : vector<16x128xf32>
    %cst_4 = arith.constant 0.000000e+00 : f32
    %10 = vector.broadcast %cst_4 : f32 to vector<16x128xf32>
    %11 = arith.subf %10, %9 : vector<16x128xf32>
    %12 = math.exp %11 : vector<16x128xf32>
    %13 = math.log1p %12 : vector<16x128xf32>
    %14 = arith.addf %8, %13 : vector<16x128xf32>
    %c0_5 = arith.constant 0 : index
    %c0_6 = arith.constant 0 : index
    %15 = vector.load %arg3[%c0_5, %c0_6] : memref<8x128xf32, #tpu.memory_space<vmem>>, vector<8x128xf32>
    %16 = vector.shape_cast %14 : vector<16x128xf32> to vector<2x8x128xf32>
    %cst_7 = arith.constant dense<0.000000e+00> : vector<8x128xf32>
    %17 = vector.multi_reduction <add>, %16, %cst_7 [0] : vector<2x8x128xf32> to vector<8x128xf32>
    %18 = arith.addf %15, %17 : vector<8x128xf32>
    %c0_8 = arith.constant 0 : index
    %c0_9 = arith.constant 0 : index
    %19 = vector.load %arg3[%c0_8, %c0_9] : memref<8x128xf32, #tpu.memory_space<vmem>>, vector<8x128xf32>
    tpu.vector_store %arg3[%c0_8, %c0_9], %18 {strides = array<i32>} : memref<8x128xf32, #tpu.memory_space<vmem>>, vector<8x128xf32>,
    return
  }
  func.func @transform_0(%arg0: i32) -> (i32, i32) {
    %c0_i32 = arith.constant 0 : i32
    %c0_i32_0 = arith.constant 0 : i32
    return %arg0, %c0_i32 : i32, i32
  }
  func.func @transform_1(%arg0: i32) -> (i32, i32) {
    %c0_i32 = arith.constant 0 : i32
    %c0_i32_0 = arith.constant 0 : i32
    return %arg0, %c0_i32 : i32, i32
  }
  func.func @transform_2(%arg0: i32) -> (i32, i32) {
    %c0_i32 = arith.constant 0 : i32
    %c0_i32_0 = arith.constant 0 : i32
    %c0_i32_1 = arith.constant 0 : i32
    return %c0_i32, %c0_i32_0 : i32, i32
  }
}

</mosaic_0001>

<llo_original>
// kernel: reconstruction_loss.1
$region0: #{reconstruction_loss.1}
  #allocation0 [shape = 'u32[]', space=smem, size = 0x4, offset = 0x4, fixed_abs, tag = 'smem constant byte address 0x4 - core index']
  #allocation1 [shape = 'u32[144,128]{1,0:T(1,128)}', space=vmem, size = 0x12000, scoped, tag = 'internal scratch']
  %s0 = inlined_call_operand.vmem [shape: f32[16,128], index: 0, kind: input, shape index: {}]
  %s1 = inlined_call_operand.vmem [shape: f32[16,128], index: 1, kind: input, shape index: {}]
  %s2 = inlined_call_operand.vmem [shape: f32[8,128], index: 2, kind: output, shape index: {}]
  %s3 = sld [smem:[#allocation0]]
  $region22: #{reconstruction_loss.1} parent=0
    _
  %s5 = ssub.s32 1, %s3
  %s6 = scalar_select 0, %s5, %s3
  // Predicated region
  $region2: #{reconstruction_loss.1} parent=0 // pred_check
    _
  $region3: #{reconstruction_loss.1} parent=0 // pred_check_branch
    %8 = sbr.rel (0) target = $region5
  $region4: #{reconstruction_loss.1} parent=0 // pred_region
    _
  $region5: #{reconstruction_loss.1} parent=0 // pred_fallthru
    _
  // Predicated region
  $region6: #{reconstruction_loss.1} parent=0 // pred_check
    _
  $region7: #{reconstruction_loss.1} parent=0 // pred_check_branch
    %10 = sbr.rel (0) target = $region9
  $region8: #{reconstruction_loss.1} parent=0 // pred_region
    _
  $region9: #{reconstruction_loss.1} parent=0 // pred_fallthru
    _
  %p11 = scmp.eq.s32.totalorder 0, 0
  // Predicated region
  $region10: #{reconstruction_loss.1} parent=0 // pred_check
    %p12 = pneg %p11
  $region11: #{reconstruction_loss.1} parent=0 // pred_check_branch
    %14 = sbr.rel (%p12) target = $region13
  $region12: #{reconstruction_loss.1} parent=0 // pred_region
    %15 = vst [vmem:[%s2] sm:$0xff] 0.0
  $region13: #{reconstruction_loss.1} parent=0 // pred_fallthru
    _
  %v16 = vld [vmem:[%s0] sm:$0xff]
  %v17 = vld [vmem:[%s0 + $0x8] sm:$0xff]
  %v18 = vld [vmem:[%s1] sm:$0xff]
  %v19 = vld [vmem:[%s1 + $0x8] sm:$0xff]
  %v20 = vmax.f32 %v16, 0.0
  %v21 = vmax.f32 %v17, 0.0
  %v22 = vmul.f32 %v16, %v18
  %v23 = vmul.f32 %v17, %v19
  %v24 = vsub.f32 %v20, %v22
  %v25 = vsub.f32 %v21, %v23
  %v26 = vand.u32 2147483647, %v16
  %v27 = vand.u32 2147483647, %v17
  %v28 = vsub.f32 0.0, %v26
  %v29 = vsub.f32 0.0, %v27
  %v30 = vmul.f32 %v28, 1.442695
  %v31 = vpow.pop %v30
  %v32 = vmul.f32 %v29, 1.442695
  %v33 = vpow.pop %v32
  %v34 = vadd.f32 %v31, 1.0
  %v35 = vlog2.pop %v34
  %v36 = vmul.f32 %v35, 0.6931472
  %v37 = vmul.f32 -0.5, %v31
  %v38 = vadd.f32 %v37, 1.0
  %v39 = vmul.f32 %v38, %v31
  %v40 = vand.u32 2147483647, %v31
  %vm41 = vcmp.lt.f32.partialorder %v40, 0.0004427343
  %v42 = vsel %vm41, %v39, %v36
  %v43 = vadd.f32 %v33, 1.0
  %v44 = vlog2.pop %v43
  %v45 = vmul.f32 %v44, 0.6931472
  %v46 = vmul.f32 -0.5, %v33
  %v47 = vadd.f32 %v46, 1.0
  %v48 = vmul.f32 %v47, %v33
  %v49 = vand.u32 2147483647, %v33
  %vm50 = vcmp.lt.f32.partialorder %v49, 0.0004427343
  %v51 = vsel %vm50, %v48, %v45
  %v52 = vadd.f32 %v24, %v42
  %v53 = vadd.f32 %v25, %v51
  %v54 = vld [vmem:[%s2] sm:$0xff]
  %v55 = vadd.f32 %v52, %v53
  %v56 = vadd.f32 %v54, %v55
  %57 = vst [vmem:[%s2] sm:$0xff] %v56
  // Predicated region
  $region14: #{reconstruction_loss.1} parent=0 // pred_check
    _
  $region15: #{reconstruction_loss.1} parent=0 // pred_check_branch
    %59 = sbr.rel (0) target = $region17
  $region16: #{reconstruction_loss.1} parent=0 // pred_region
    _
  $region17: #{reconstruction_loss.1} parent=0 // pred_fallthru
    _
  // Predicated region
  $region18: #{reconstruction_loss.1} parent=0 // pred_check
    _
  $region19: #{reconstruction_loss.1} parent=0 // pred_check_branch
    %61 = sbr.rel (0) target = $region21
  $region20: #{reconstruction_loss.1} parent=0 // pred_region
    _
  $region21: #{reconstruction_loss.1} parent=0 // pred_fallthru
    _

</llo_original>
